<compile_context>
chip_gen: v7x
topology: tpu7x:2x2x1
jax: 0.10.0
libtpu: 0.0.40
codegen_flags: <defaults>
</compile_context>

<pallas_src>
import functools

import jax
import jax.numpy as jnp
from jax.experimental import pallas as pl
from jax.experimental.pallas import tpu as pltpu


def _encoder_kernel(x_ref, y_ref, w0x_ref, w0y_ref, b0_ref,
                    w1_ref, b1_ref, w2_ref, b2_ref,
                    out_ref, acc_ref, *, inv_set_size):
    """One (batch b, set-chunk s) step of the encoder.

    x_ref   : (1, tS, x_dim)   context_x tile for batch b, set chunk s
    y_ref   : (1, tS, 1)       context_y tile
    w0x_ref : (x_dim, H)       first-layer weight rows acting on x
    w0y_ref : (1, H)           first-layer weight row acting on y
    bN_ref  : (1, H|d_out)     biases
    w1_ref  : (H, H), w2_ref : (H, d_out)
    out_ref : (1, 1, d_out)    per-batch representation (resident across s)
    acc_ref : (1, H)           running set-sum of relu(h1) for batch b
    """
    s = pl.program_id(1)

    @pl.when(s == 0)
    def _():
        acc_ref[...] = jnp.zeros_like(acc_ref)

    x = x_ref[0]                                   # (tS, x_dim)
    y = y_ref[0]                                   # (tS, 1)

    # layer 0: split linear over (x, y) -> no concat / input padding needed
    h = jnp.dot(x, w0x_ref[...], preferred_element_type=jnp.float32)
    h = h + y * w0y_ref[...] + b0_ref[...]         # (tS,1)*(1,H) broadcast on VPU
    h = jnp.maximum(h, 0.0)

    # layer 1
    h = jnp.dot(h, w1_ref[...], preferred_element_type=jnp.float32) + b1_ref[...]
    h = jnp.maximum(h, 0.0)

    # partial set-sum; the mean is hoisted above the final (linear) layer
    acc_ref[...] += jnp.sum(h, axis=0, keepdims=True)

    @pl.when(s == pl.num_programs(1) - 1)
    def _():
        mean = acc_ref[...] * inv_set_size         # (1, H)
        rep = jnp.dot(mean, w2_ref[...],
                      preferred_element_type=jnp.float32) + b2_ref[...]
        out_ref[0] = rep                           # (1, d_out)


def init_params(key, sizes):
    """Deterministic init mimicking nn.Linear (uniform +/- 1/sqrt(fan_in)).

    Weights are stored as (in_features, out_features) so the kernel does x @ W.
    """
    params = []
    for i in range(len(sizes) - 1):
        fan_in, fan_out = sizes[i], sizes[i + 1]
        key, kw, kb = jax.random.split(key, 3)
        bound = 1.0 / jnp.sqrt(jnp.float32(fan_in))
        w = jax.random.uniform(kw, (fan_in, fan_out), jnp.float32, -bound, bound)
        b = jax.random.uniform(kb, (1, fan_out), jnp.float32, -bound, bound)
        params.append((w, b))
    return params


def _pick_set_tile(set_size, cap):
    """Largest multiple-of-8 divisor of set_size that is <= cap, else full extent."""
    if set_size <= cap:
        return set_size
    for t in range(cap - cap % 8, 7, -8):
        if set_size % t == 0:
            return t
    return set_size  # full-extent block is always legal


@functools.partial(jax.jit, static_argnames=("set_tile",))
def deterministic_encoder(context_x, context_y, w0, b0, w1, b1, w2, b2,
                          *, set_tile=512):
    B, S, x_dim = context_x.shape
    H = w0.shape[1]
    d_out = w2.shape[1]

    # Split the first weight instead of concatenating / padding the inputs.
    w0x = w0[:x_dim, :]                            # (x_dim, H)
    w0y = w0[x_dim:, :]                            # (1, H)

    tS = _pick_set_tile(S, set_tile)
    grid = (B, S // tS)

    kernel = functools.partial(_encoder_kernel, inv_set_size=1.0 / S)

    out = pl.pallas_call(
        kernel,
        out_shape=jax.ShapeDtypeStruct((B, 1, d_out), jnp.float32),
        grid_spec=pltpu.PrefetchScalarGridSpec(
            num_scalar_prefetch=0,
            grid=grid,
            in_specs=[
                # per (batch, set-chunk) activation tiles
                pl.BlockSpec((1, tS, x_dim), lambda b, s: (b, s, 0)),
                pl.BlockSpec((1, tS, 1), lambda b, s: (b, s, 0)),
                # weights / biases: VMEM-resident (constant block index)
                pl.BlockSpec((x_dim, H), lambda b, s: (0, 0)),
                pl.BlockSpec((1, H), lambda b, s: (0, 0)),
                pl.BlockSpec((1, H), lambda b, s: (0, 0)),
                pl.BlockSpec((H, H), lambda b, s: (0, 0)),
                pl.BlockSpec((1, H), lambda b, s: (0, 0)),
                pl.BlockSpec((H, d_out), lambda b, s: (0, 0)),
                pl.BlockSpec((1, d_out), lambda b, s: (0, 0)),
            ],
            out_specs=pl.BlockSpec((1, 1, d_out), lambda b, s: (b, 0, 0)),
            scratch_shapes=[pltpu.VMEM((1, H), jnp.float32)],
        ),
        compiler_params=pltpu.CompilerParams(
            # batch axis shards across TensorCores (v7x); set axis is a reduction
            dimension_semantics=("parallel", "arbitrary"),
            vmem_limit_bytes=32 * 1024 * 1024,
        ),
    )(context_x.astype(jnp.float32), context_y.astype(jnp.float32),
      w0x, w0y, b0, w1, b1, w2, b2)

    return out.reshape(B, d_out)


def reference_encoder(context_x, context_y, params):
    """Pure-JAX reference matching the PyTorch forward."""
    B, S, _ = context_x.shape
    x = jnp.concatenate([context_x, context_y], axis=-1).reshape(B * S, -1)
    for i, (w, b) in enumerate(params):
        x = x @ w + b
        if i < len(params) - 1:
            x = jnp.maximum(x, 0.0)
    x = x.reshape(B, S, -1)
    return x.mean(axis=1)


if __name__ == "__main__":
    key = jax.random.PRNGKey(0)

    # Small shapes consistent with the module: x_dim=2, y_dim=1 -> sizes[0]=3
    batch_size, set_size, x_dim = 2, 8, 2
    sizes = [x_dim + 1, 32, 32, 32]

    k_params, k_x, k_y = jax.random.split(key, 3)
    params = init_params(k_params, sizes)
    (w0, b0), (w1, b1), (w2, b2) = params

    context_x = jax.random.normal(k_x, (batch_size, set_size, x_dim), jnp.float32)
    context_y = jax.random.normal(k_y, (batch_size, set_size, 1), jnp.float32)

    out = deterministic_encoder(context_x, context_y, w0, b0, w1, b1, w2, b2)
    out = jax.block_until_ready(out)

    ref = reference_encoder(context_x, context_y, params)
    assert out.shape == (batch_size, sizes[-1]), out.shape
    assert jnp.allclose(out, ref, atol=1e-5, rtol=1e-5), (out, ref)

    # Second check: a larger set size with a small set_tile so the grid's
    # reduction axis actually iterates (exercises the accumulator init/finalize).
    set_size2 = 32
    k_x2, k_y2 = jax.random.split(jax.random.PRNGKey(1))
    cx2 = jax.random.normal(k_x2, (batch_size, set_size2, x_dim), jnp.float32)
    cy2 = jax.random.normal(k_y2, (batch_size, set_size2, 1), jnp.float32)
    out2 = jax.block_until_ready(
        deterministic_encoder(cx2, cy2, w0, b0, w1, b1, w2, b2, set_tile=8))
    ref2 = reference_encoder(cx2, cy2, params)
    assert jnp.allclose(out2, ref2, atol=1e-5, rtol=1e-5), (out2, ref2)

    print("KERNEL_OK")
</pallas_src>

<mosaic_0001>
module attributes {stable_mosaic.version = 11 : i64} {
  func.func @_encoder_kernel(%arg0: i32, %arg1: i32, %arg2: memref<1x8x2xf32, #tpu.memory_space<vmem>>, %arg3: memref<1x8x1xf32, #tpu.memory_space<vmem>>, %arg4: memref<2x32xf32, #tpu.memory_space<vmem>>, %arg5: memref<1x32xf32, #tpu.memory_space<vmem>>, %arg6: memref<1x32xf32, #tpu.memory_space<vmem>>, %arg7: memref<32x32xf32, #tpu.memory_space<vmem>>, %arg8: memref<1x32xf32, #tpu.memory_space<vmem>>, %arg9: memref<32x32xf32, #tpu.memory_space<vmem>>, %arg10: memref<1x32xf32, #tpu.memory_space<vmem>>, %arg11: memref<1x1x32xf32, #tpu.memory_space<vmem>>, %arg12: memref<1x32xf32, #tpu.memory_space<vmem>>) attributes {dimension_semantics = [#tpu.dimension_semantics<parallel>, #tpu.dimension_semantics<arbitrary>], iteration_bounds = array<i64: 2, 1>, scalar_prefetch = 0 : i64, scratch_operands = 1 : i64, tpu.core_type = #tpu.core_type<tc>, window_params = [{transform_indices = @transform_0, window_bounds = array<i64: 1, 8, 2>}, {transform_indices = @transform_1, window_bounds = array<i64: 1, 8, 1>}, {pipeline_mode = #tpu.pipeline_mode<synchronous>, transform_indices = @transform_2, window_bounds = array<i64: 2, 32>}, {pipeline_mode = #tpu.pipeline_mode<synchronous>, transform_indices = @transform_3, window_bounds = array<i64: 1, 32>}, {pipeline_mode = #tpu.pipeline_mode<synchronous>, transform_indices = @transform_4, window_bounds = array<i64: 1, 32>}, {pipeline_mode = #tpu.pipeline_mode<synchronous>, transform_indices = @transform_5, window_bounds = array<i64: 32, 32>}, {pipeline_mode = #tpu.pipeline_mode<synchronous>, transform_indices = @transform_6, window_bounds = array<i64: 1, 32>}, {pipeline_mode = #tpu.pipeline_mode<synchronous>, transform_indices = @transform_7, window_bounds = array<i64: 32, 32>}, {pipeline_mode = #tpu.pipeline_mode<synchronous>, transform_indices = @transform_8, window_bounds = array<i64: 1, 32>}, {transform_indices = @transform_9, window_bounds = array<i64: 1, 1, 32>}]} {
    %c0_i32 = arith.constant 0 : i32
    %0 = arith.cmpi eq, %arg1, %c0_i32 : i32
    %1 = arith.extui %0 : i1 to i32
    %c0_i32_0 = arith.constant 0 : i32
    %2 = arith.cmpi ne, %1, %c0_i32_0 : i32
    scf.if %2 {
      %cst_26 = arith.constant 0.000000e+00 : f32
      %34 = vector.broadcast %cst_26 : f32 to vector<1x32xf32>
      %c0_27 = arith.constant 0 : index
      %c0_28 = arith.constant 0 : index
      %35 = vector.load %arg12[%c0_27, %c0_28] : memref<1x32xf32, #tpu.memory_space<vmem>>, vector<1x32xf32>
      tpu.vector_store %arg12[%c0_27, %c0_28], %34 {strides = array<i32>} : memref<1x32xf32, #tpu.memory_space<vmem>>, vector<1x32xf32>,
    } else {
    }
    %c0 = arith.constant 0 : index
    %c0_1 = arith.constant 0 : index
    %c0_2 = arith.constant 0 : index
    %3 = vector.load %arg2[%c0, %c0_1, %c0_2] : memref<1x8x2xf32, #tpu.memory_space<vmem>>, vector<1x8x2xf32>
    %4 = vector.shape_cast %3 : vector<1x8x2xf32> to vector<8x2xf32>
    %c0_3 = arith.constant 0 : index
    %c0_4 = arith.constant 0 : index
    %c0_5 = arith.constant 0 : index
    %5 = vector.load %arg3[%c0_3, %c0_4, %c0_5] : memref<1x8x1xf32, #tpu.memory_space<vmem>>, vector<1x8x1xf32>
    %6 = vector.shape_cast %5 : vector<1x8x1xf32> to vector<8x1xf32>
    %c0_6 = arith.constant 0 : index
    %c0_7 = arith.constant 0 : index
    %7 = vector.load %arg4[%c0_6, %c0_7] : memref<2x32xf32, #tpu.memory_space<vmem>>, vector<2x32xf32>
    %cst = arith.constant dense<0.000000e+00> : vector<8x32xf32>
    %8 = tpu.matmul %4, %7, %cst {dimension_numbers = #tpu.dot_dimension_numbers<[1], [0], [0], [1], [0, 0, 1, 1], [], []>} : vector<8x2xf32>, vector<2x32xf32>, vector<8x32xf32> -> vector<8x32xf32>
    %c0_8 = arith.constant 0 : index
    %c0_9 = arith.constant 0 : index
    %9 = vector.load %arg5[%c0_8, %c0_9] : memref<1x32xf32, #tpu.memory_space<vmem>>, vector<1x32xf32>
    %10 = vector.broadcast %6 : vector<8x1xf32> to vector<8x32xf32>
    %11 = vector.broadcast %9 : vector<1x32xf32> to vector<8x32xf32>
    %12 = arith.mulf %10, %11 : vector<8x32xf32>
    %13 = arith.addf %8, %12 : vector<8x32xf32>
    %c0_10 = arith.constant 0 : index
    %c0_11 = arith.constant 0 : index
    %14 = vector.load %arg6[%c0_10, %c0_11] : memref<1x32xf32, #tpu.memory_space<vmem>>, vector<1x32xf32>
    %15 = vector.broadcast %14 : vector<1x32xf32> to vector<8x32xf32>
    %16 = arith.addf %13, %15 : vector<8x32xf32>
    %cst_12 = arith.constant 0.000000e+00 : f32
    %17 = vector.broadcast %cst_12 : f32 to vector<8x32xf32>
    %18 = arith.maximumf %16, %17 : vector<8x32xf32>
    %c0_13 = arith.constant 0 : index
    %c0_14 = arith.constant 0 : index
    %19 = vector.load %arg7[%c0_13, %c0_14] : memref<32x32xf32, #tpu.memory_space<vmem>>, vector<32x32xf32>
    %cst_15 = arith.constant dense<0.000000e+00> : vector<8x32xf32>
    %20 = tpu.matmul %18, %19, %cst_15 {dimension_numbers = #tpu.dot_dimension_numbers<[1], [0], [0], [1], [0, 0, 1, 1], [], []>} : vector<8x32xf32>, vector<32x32xf32>, vector<8x32xf32> -> vector<8x32xf32>
    %c0_16 = arith.constant 0 : index
    %c0_17 = arith.constant 0 : index
    %21 = vector.load %arg8[%c0_16, %c0_17] : memref<1x32xf32, #tpu.memory_space<vmem>>, vector<1x32xf32>
    %22 = vector.broadcast %21 : vector<1x32xf32> to vector<8x32xf32>
    %23 = arith.addf %20, %22 : vector<8x32xf32>
    %cst_18 = arith.constant 0.000000e+00 : f32
    %24 = vector.broadcast %cst_18 : f32 to vector<8x32xf32>
    %25 = arith.maximumf %23, %24 : vector<8x32xf32>
    %c0_19 = arith.constant 0 : index
    %c0_20 = arith.constant 0 : index
    %26 = vector.load %arg12[%c0_19, %c0_20] : memref<1x32xf32, #tpu.memory_space<vmem>>, vector<1x32xf32>
    %cst_21 = arith.constant dense<0.000000e+00> : vector<32xf32>
    %27 = vector.multi_reduction <add>, %25, %cst_21 [0] : vector<8x32xf32> to vector<32xf32>
    %28 = vector.shape_cast %27 : vector<32xf32> to vector<1x32xf32>
    %29 = arith.addf %26, %28 : vector<1x32xf32>
    %c0_22 = arith.constant 0 : index
    %c0_23 = arith.constant 0 : index
    %30 = vector.load %arg12[%c0_22, %c0_23] : memref<1x32xf32, #tpu.memory_space<vmem>>, vector<1x32xf32>
    tpu.vector_store %arg12[%c0_22, %c0_23], %29 {strides = array<i32>} : memref<1x32xf32, #tpu.memory_space<vmem>>, vector<1x32xf32>,
    %c0_i32_24 = arith.constant 0 : i32
    %31 = arith.cmpi eq, %arg1, %c0_i32_24 : i32
    %32 = arith.extui %31 : i1 to i32
    %c0_i32_25 = arith.constant 0 : i32
    %33 = arith.cmpi ne, %32, %c0_i32_25 : i32
    scf.if %33 {
      %c0_26 = arith.constant 0 : index
      %c0_27 = arith.constant 0 : index
      %34 = vector.load %arg12[%c0_26, %c0_27] : memref<1x32xf32, #tpu.memory_space<vmem>>, vector<1x32xf32>
      %cst_28 = arith.constant 1.250000e-01 : f32
      %35 = vector.broadcast %cst_28 : f32 to vector<1x32xf32>
      %36 = arith.mulf %34, %35 : vector<1x32xf32>
      %c0_29 = arith.constant 0 : index
      %c0_30 = arith.constant 0 : index
      %37 = vector.load %arg9[%c0_29, %c0_30] : memref<32x32xf32, #tpu.memory_space<vmem>>, vector<32x32xf32>
      %cst_31 = arith.constant dense<0.000000e+00> : vector<1x32xf32>
      %38 = tpu.matmul %36, %37, %cst_31 {dimension_numbers = #tpu.dot_dimension_numbers<[1], [0], [0], [1], [0, 0, 1, 1], [], []>} : vector<1x32xf32>, vector<32x32xf32>, vector<1x32xf32> -> vector<1x32xf32>
      %c0_32 = arith.constant 0 : index
      %c0_33 = arith.constant 0 : index
      %39 = vector.load %arg10[%c0_32, %c0_33] : memref<1x32xf32, #tpu.memory_space<vmem>>, vector<1x32xf32>
      %40 = arith.addf %38, %39 : vector<1x32xf32>
      %c0_34 = arith.constant 0 : index
      %c0_35 = arith.constant 0 : index
      %c0_36 = arith.constant 0 : index
      %41 = vector.load %arg11[%c0_34, %c0_35, %c0_36] : memref<1x1x32xf32, #tpu.memory_space<vmem>>, vector<1x1x32xf32>
      %42 = vector.shape_cast %41 : vector<1x1x32xf32> to vector<1x32xf32>
      %43 = vector.shape_cast %40 : vector<1x32xf32> to vector<1x1x32xf32>
      tpu.vector_store %arg11[%c0_34, %c0_35, %c0_36], %43 {strides = array<i32>} : memref<1x1x32xf32, #tpu.memory_space<vmem>>, vector<1x1x32xf32>,
    } else {
    }
    return
  }
  func.func @transform_0(%arg0: i32, %arg1: i32) -> (i32, i32, i32) {
    %c0_i32 = arith.constant 0 : i32
    %c0_i32_0 = arith.constant 0 : i32
    return %arg0, %arg1, %c0_i32 : i32, i32, i32
  }
  func.func @transform_1(%arg0: i32, %arg1: i32) -> (i32, i32, i32) {
    %c0_i32 = arith.constant 0 : i32
    %c0_i32_0 = arith.constant 0 : i32
    return %arg0, %arg1, %c0_i32 : i32, i32, i32
  }
  func.func @transform_2(%arg0: i32, %arg1: i32) -> (i32, i32) {
    %c0_i32 = arith.constant 0 : i32
    %c0_i32_0 = arith.constant 0 : i32
    %c0_i32_1 = arith.constant 0 : i32
    return %c0_i32, %c0_i32_0 : i32, i32
  }
  func.func @transform_3(%arg0: i32, %arg1: i32) -> (i32, i32) {
    %c0_i32 = arith.constant 0 : i32
    %c0_i32_0 = arith.constant 0 : i32
    %c0_i32_1 = arith.constant 0 : i32
    return %c0_i32, %c0_i32_0 : i32, i32
  }
  func.func @transform_4(%arg0: i32, %arg1: i32) -> (i32, i32) {
    %c0_i32 = arith.constant 0 : i32
    %c0_i32_0 = arith.constant 0 : i32
    %c0_i32_1 = arith.constant 0 : i32
    return %c0_i32, %c0_i32_0 : i32, i32
  }
  func.func @transform_5(%arg0: i32, %arg1: i32) -> (i32, i32) {
    %c0_i32 = arith.constant 0 : i32
    %c0_i32_0 = arith.constant 0 : i32
    %c0_i32_1 = arith.constant 0 : i32
    return %c0_i32, %c0_i32_0 : i32, i32
  }
  func.func @transform_6(%arg0: i32, %arg1: i32) -> (i32, i32) {
    %c0_i32 = arith.constant 0 : i32
    %c0_i32_0 = arith.constant 0 : i32
    %c0_i32_1 = arith.constant 0 : i32
    return %c0_i32, %c0_i32_0 : i32, i32
  }
  func.func @transform_7(%arg0: i32, %arg1: i32) -> (i32, i32) {
    %c0_i32 = arith.constant 0 : i32
    %c0_i32_0 = arith.constant 0 : i32
    %c0_i32_1 = arith.constant 0 : i32
    return %c0_i32, %c0_i32_0 : i32, i32
  }
  func.func @transform_8(%arg0: i32, %arg1: i32) -> (i32, i32) {
    %c0_i32 = arith.constant 0 : i32
    %c0_i32_0 = arith.constant 0 : i32
    %c0_i32_1 = arith.constant 0 : i32
    return %c0_i32, %c0_i32_0 : i32, i32
  }
  func.func @transform_9(%arg0: i32, %arg1: i32) -> (i32, i32, i32) {
    %c0_i32 = arith.constant 0 : i32
    %c0_i32_0 = arith.constant 0 : i32
    %c0_i32_1 = arith.constant 0 : i32
    return %arg0, %c0_i32, %c0_i32_0 : i32, i32, i32
  }
}

</mosaic_0001>

<llo_original>
// kernel: deterministic_encoder.1
$region0: #{deterministic_encoder.1}
  #allocation0 [shape = 'u32[]', space=smem, size = 0x4, offset = 0x4, fixed_abs, tag = 'smem constant byte address 0x4 - core index']
  #allocation1 [shape = 'u32[144,128]{1,0:T(1,128)}', space=vmem, size = 0x12000, scoped, tag = 'internal scratch']
  #allocation2 [shape = 'f32[1,32]{1,0:T(1,128)}', space=vmem, size = 0x200, scoped, tag = 'scratch operand']
  %s0 = inlined_call_operand.vmem [shape: f32[2,8,2], index: 0, kind: input, shape index: {}]
  %s1 = inlined_call_operand.vmem [shape: f32[2,8,1], index: 1, kind: input, shape index: {}]
  %s2 = inlined_call_operand.vmem [shape: f32[2,32], index: 2, kind: input, shape index: {}]
  %s3 = inlined_call_operand.vmem [shape: f32[1,32], index: 3, kind: input, shape index: {}]
  %s4 = inlined_call_operand.hbm [shape: f32[1,32], index: 4, kind: input, shape index: {}]
  %s5 = inlined_call_operand.vmem [shape: f32[32,32], index: 5, kind: input, shape index: {}]
  %s6 = inlined_call_operand.hbm [shape: f32[1,32], index: 6, kind: input, shape index: {}]
  %s7 = inlined_call_operand.vmem [shape: f32[32,32], index: 7, kind: input, shape index: {}]
  %s8 = inlined_call_operand.hbm [shape: f32[1,32], index: 8, kind: input, shape index: {}]
  %s9 = inlined_call_operand.hbm [shape: f32[2,1,32], index: 9, kind: output, shape index: {}]
  %s10 = sld [smem:[#allocation0]]
  $region89: #{deterministic_encoder.1} parent=0
    _
  %s12 = ssub.s32 1, %s10
  %s13 = scalar_select 0, %s12, %s10
  $region1: #{deterministic_encoder.1} parent=0
    #allocation3 [shape = 'u8[512]{0}', space=vmem, size = 0x400, scoped, tag = 'input window, operand 4, single buffered']
    #allocation4 [shape = 's32[2]{0}', space=sflag, size = 0x8, scoped, tag = 'scoped memory for deterministic_encoder.1']
    #allocation5 [shape = 's32[2]{0}', space=sflag, size = 0x8, scoped, tag = 'scoped memory for deterministic_encoder.1']
    #allocation6 [shape = 'u8[512]{0}', space=vmem, size = 0x400, scoped, tag = 'input window, operand 6, single buffered']
    #allocation7 [shape = 's32[1]{0}', space=sflag, size = 0x4, scoped, tag = 'scoped memory for deterministic_encoder.1']
    #allocation8 [shape = 'u8[512]{0}', space=vmem, size = 0x400, scoped, tag = 'input window, operand 8, single buffered']
    #allocation9 [shape = 'u8[1024]{0}', space=vmem, size = 0x400, scoped, tag = 'output window, operand 0']
    %14 = vsyncpa [#allocation4], 0
    %15 = vsyncpa [#allocation7], 0
    %16 = vsyncpa [#allocation5], 0
    %s17 = scalar_lea.sflag [#allocation5], 1
    %18 = vsyncpa %s17, 0
    loop: start=0, step=1, limit=4
    $region2: #{deterministic_encoder.1} parent=1 // loop_pre_header
      _
    $region3: #{deterministic_encoder.1} parent=1 // loop_header
      %s20 = sphi 0, %s24
      %p21 = scmp.ge.s32.totalorder %s20, 4
      %s27 = sphi 0, %s39
      %s28 = sphi 0, %s35
      %s29 = sphi 0, %s27
      %s30 = sphi 0, %s28
      %s31 = sphi 0, %s29
      %s32 = sphi 0, %s30
      %s44 = sphi 0, %s46
      %s47 = sphi 0, %s44
      %s48 = sphi 0, %s47
      %s64 = sphi 0, %s48
      %s72 = sphi 0, %s74
      %s75 = sphi 0, %s72
      %s76 = sphi 0, %s75
      %s92 = sphi 0, %s76
      %s96 = sphi 0, %s96
      %s98 = sphi 0, %s96
      %s99 = sphi 0, %s98
      %s113 = sphi 0, %s99
      %s117 = sphi 0, %s117
      %s119 = sphi 0, %s117
      %s120 = sphi 0, %s119
      %s134 = sphi 0, %s120
      %s138 = sphi 0, %s138
      %s140 = sphi 0, %s138
      %s141 = sphi 0, %s140
      %s155 = sphi 0, %s141
      %s159 = sphi 0, %s159
      %s161 = sphi 0, %s159
      %s162 = sphi 0, %s161
      %s176 = sphi 0, %s162
      %s180 = sphi 0, %s180
      %s182 = sphi 0, %s180
      %s183 = sphi 0, %s182
      %s197 = sphi 0, %s183
      %s201 = sphi 0, %s201
      %s203 = sphi 0, %s201
      %s204 = sphi 0, %s203
      %s218 = sphi 0, %s204
      %s222 = sphi 0, %s222
      %s224 = sphi 0, %s222
      %s225 = sphi 0, %s224
      %s239 = sphi 0, %s225
      %s245 = sphi 0, %s247
      %s248 = sphi 0, %s245
      %s249 = sphi 0, %s248
      %s265 = sphi 0, %s249
    $region4: #{deterministic_encoder.1} parent=1 // loop_header_branch
      %23 = sbr.rel (%p21) target = $region8
    $region5: #{deterministic_encoder.1} parent=1 // loop_body
      %s25 = ssub.s32 %s20, 1
      %s26 = ssub.s32 %s20, 2
      %s33 = sadd.s32 1, %s28
      %p34 = scmp.ge.s32.totalorder %s33, 1
      %s35 = scalar_select %p34, 0, %s33
      %s36 = sadd.s32 1, %s27
      %s37 = scalar_select %p34, %s36, %s27
      %p38 = scmp.ge.s32.totalorder %s37, 2
      %s39 = scalar_select %p38, 0, %s37
      %s40 = ssub.s32 %s27, %s39
      %s41 = ssub.s32 %s28, %s35
      %s42 = sor.u32 %s40, %s41
      %p43 = scmp.eq.s32.totalorder %s42, 0
      %s45 = sadd.s32 %s44, 1
      %s46 = scalar_select %p43, %s44, %s45
      %p49 = pneg %p43
      %p50 = scmp.eq.s32.totalorder %s20, 1
      %p51 = por %p49, %p50
      %p52 = scmp.ne.s32.totalorder %s44, %s47
      %p53 = scmp.eq.s32.totalorder %s20, 0
      %p54 = por %p52, %p53
      %p55 = scmp.ne.s32.totalorder %s44, %s47
      %p56 = scmp.eq.s32.totalorder %s25, 1
      %p57 = por %p55, %p56
      %p58 = scmp.ne.s32.totalorder %s47, %s48
      %p59 = scmp.eq.s32.totalorder %s25, 0
      %p60 = por %p58, %p59
      %p61 = scmp.ne.s32.totalorder %s47, %s48
      %p62 = scmp.eq.s32.totalorder %s26, 1
      %p63 = por %p61, %p62
      %p65 = scmp.ne.s32.totalorder %s48, %s64
      %p66 = scmp.eq.s32.totalorder %s26, 0
      %p67 = por %p65, %p66
      %s68 = ssub.s32 %s27, %s39
      %s69 = ssub.s32 %s28, %s35
      %s70 = sor.u32 %s68, %s69
      %p71 = scmp.eq.s32.totalorder %s70, 0
      %s73 = sadd.s32 %s72, 1
      %s74 = scalar_select %p71, %s72, %s73
      %p77 = pneg %p71
      %p78 = scmp.eq.s32.totalorder %s20, 1
      %p79 = por %p77, %p78
      %p80 = scmp.ne.s32.totalorder %s72, %s75
      %p81 = scmp.eq.s32.totalorder %s20, 0
      %p82 = por %p80, %p81
      %p83 = scmp.ne.s32.totalorder %s72, %s75
      %p84 = scmp.eq.s32.totalorder %s25, 1
      %p85 = por %p83, %p84
      %p86 = scmp.ne.s32.totalorder %s75, %s76
      %p87 = scmp.eq.s32.totalorder %s25, 0
      %p88 = por %p86, %p87
      %p89 = scmp.ne.s32.totalorder %s75, %s76
      %p90 = scmp.eq.s32.totalorder %s26, 1
      %p91 = por %p89, %p90
      %p93 = scmp.ne.s32.totalorder %s76, %s92
      %p94 = scmp.eq.s32.totalorder %s26, 0
      %p95 = por %p93, %p94
      %s97 = sadd.s32 %s96, 1
      %p100 = scmp.eq.s32.totalorder %s20, 1
      %p101 = scmp.ne.s32.totalorder %s96, %s98
      %p102 = scmp.eq.s32.totalorder %s20, 0
      %p103 = por %p101, %p102
      %p104 = scmp.ne.s32.totalorder %s96, %s98
      %p105 = scmp.eq.s32.totalorder %s25, 1
      %p106 = por %p104, %p105
      %p107 = scmp.ne.s32.totalorder %s98, %s99
      %p108 = scmp.eq.s32.totalorder %s25, 0
      %p109 = por %p107, %p108
      %p110 = scmp.ne.s32.totalorder %s98, %s99
      %p111 = scmp.eq.s32.totalorder %s26, 1
      %p112 = por %p110, %p111
      %p114 = scmp.ne.s32.totalorder %s99, %s113
      %p115 = scmp.eq.s32.totalorder %s26, 0
      %p116 = por %p114, %p115
      %s118 = sadd.s32 %s117, 1
      %p121 = scmp.eq.s32.totalorder %s20, 1
      %p122 = scmp.ne.s32.totalorder %s117, %s119
      %p123 = scmp.eq.s32.totalorder %s20, 0
      %p124 = por %p122, %p123
      %p125 = scmp.ne.s32.totalorder %s117, %s119
      %p126 = scmp.eq.s32.totalorder %s25, 1
      %p127 = por %p125, %p126
      %p128 = scmp.ne.s32.totalorder %s119, %s120
      %p129 = scmp.eq.s32.totalorder %s25, 0
      %p130 = por %p128, %p129
      %p131 = scmp.ne.s32.totalorder %s119, %s120
      %p132 = scmp.eq.s32.totalorder %s26, 1
      %p133 = por %p131, %p132
      %p135 = scmp.ne.s32.totalorder %s120, %s134
      %p136 = scmp.eq.s32.totalorder %s26, 0
      %p137 = por %p135, %p136
      %s139 = sadd.s32 %s138, 1
      %p142 = scmp.eq.s32.totalorder %s20, 1
      %p143 = scmp.ne.s32.totalorder %s138, %s140
      %p144 = scmp.eq.s32.totalorder %s20, 0
      %p145 = por %p143, %p144
      %p146 = scmp.ne.s32.totalorder %s138, %s140
      %p147 = scmp.eq.s32.totalorder %s25, 1
      %p148 = por %p146, %p147
      %p149 = scmp.ne.s32.totalorder %s140, %s141
      %p150 = scmp.eq.s32.totalorder %s25, 0
      %p151 = por %p149, %p150
      %p152 = scmp.ne.s32.totalorder %s140, %s141
      %p153 = scmp.eq.s32.totalorder %s26, 1
      %p154 = por %p152, %p153
      %p156 = scmp.ne.s32.totalorder %s141, %s155
      %p157 = scmp.eq.s32.totalorder %s26, 0
      %p158 = por %p156, %p157
      %s160 = sadd.s32 %s159, 1
      %p163 = scmp.eq.s32.totalorder %s20, 1
      %p164 = scmp.ne.s32.totalorder %s159, %s161
      %p165 = scmp.eq.s32.totalorder %s20, 0
      %p166 = por %p164, %p165
      %p167 = scmp.ne.s32.totalorder %s159, %s161
      %p168 = scmp.eq.s32.totalorder %s25, 1
      %p169 = por %p167, %p168
      %p170 = scmp.ne.s32.totalorder %s161, %s162
      %p171 = scmp.eq.s32.totalorder %s25, 0
      %p172 = por %p170, %p171
      %p173 = scmp.ne.s32.totalorder %s161, %s162
      %p174 = scmp.eq.s32.totalorder %s26, 1
      %p175 = por %p173, %p174
      %p177 = scmp.ne.s32.totalorder %s162, %s176
      %p178 = scmp.eq.s32.totalorder %s26, 0
      %p179 = por %p177, %p178
      %s181 = sadd.s32 %s180, 1
      %p184 = scmp.eq.s32.totalorder %s20, 1
      %p185 = scmp.ne.s32.totalorder %s180, %s182
      %p186 = scmp.eq.s32.totalorder %s20, 0
      %p187 = por %p185, %p186
      %p188 = scmp.ne.s32.totalorder %s180, %s182
      %p189 = scmp.eq.s32.totalorder %s25, 1
      %p190 = por %p188, %p189
      %p191 = scmp.ne.s32.totalorder %s182, %s183
      %p192 = scmp.eq.s32.totalorder %s25, 0
      %p193 = por %p191, %p192
      %p194 = scmp.ne.s32.totalorder %s182, %s183
      %p195 = scmp.eq.s32.totalorder %s26, 1
      %p196 = por %p194, %p195
      %p198 = scmp.ne.s32.totalorder %s183, %s197
      %p199 = scmp.eq.s32.totalorder %s26, 0
      %p200 = por %p198, %p199
      %s202 = sadd.s32 %s201, 1
      %p205 = scmp.eq.s32.totalorder %s20, 1
      %p206 = scmp.ne.s32.totalorder %s201, %s203
      %p207 = scmp.eq.s32.totalorder %s20, 0
      %p208 = por %p206, %p207
      %p209 = scmp.ne.s32.totalorder %s201, %s203
      %p210 = scmp.eq.s32.totalorder %s25, 1
      %p211 = por %p209, %p210
      %p212 = scmp.ne.s32.totalorder %s203, %s204
      %p213 = scmp.eq.s32.totalorder %s25, 0
      %p214 = por %p212, %p213
      %p215 = scmp.ne.s32.totalorder %s203, %s204
      %p216 = scmp.eq.s32.totalorder %s26, 1
      %p217 = por %p215, %p216
      %p219 = scmp.ne.s32.totalorder %s204, %s218
      %p220 = scmp.eq.s32.totalorder %s26, 0
      %p221 = por %p219, %p220
      %s223 = sadd.s32 %s222, 1
      %p226 = scmp.eq.s32.totalorder %s20, 1
      %p227 = scmp.ne.s32.totalorder %s222, %s224
      %p228 = scmp.eq.s32.totalorder %s20, 0
      %p229 = por %p227, %p228
      %p230 = scmp.ne.s32.totalorder %s222, %s224
      %p231 = scmp.eq.s32.totalorder %s25, 1
      %p232 = por %p230, %p231
      %p233 = scmp.ne.s32.totalorder %s224, %s225
      %p234 = scmp.eq.s32.totalorder %s25, 0
      %p235 = por %p233, %p234
      %p236 = scmp.ne.s32.totalorder %s224, %s225
      %p237 = scmp.eq.s32.totalorder %s26, 1
      %p238 = por %p236, %p237
      %p240 = scmp.ne.s32.totalorder %s225, %s239
      %p241 = scmp.eq.s32.totalorder %s26, 0
      %p242 = por %p240, %p241
      %s243 = ssub.s32 %s27, %s39
      %p244 = scmp.eq.s32.totalorder %s243, 0
      %s246 = sadd.s32 %s245, 1
      %s247 = scalar_select %p244, %s245, %s246
      %p250 = pneg %p244
      %p251 = scmp.eq.s32.totalorder %s20, 1
      %p252 = por %p250, %p251
      %p253 = scmp.ne.s32.totalorder %s245, %s248
      %p254 = scmp.eq.s32.totalorder %s20, 0
      %p255 = por %p253, %p254
      %p256 = scmp.ne.s32.totalorder %s245, %s248
      %p257 = scmp.eq.s32.totalorder %s25, 1
      %p258 = por %p256, %p257
      %p259 = scmp.ne.s32.totalorder %s248, %s249
      %p260 = scmp.eq.s32.totalorder %s25, 0
      %p261 = por %p259, %p260
      %p262 = scmp.ne.s32.totalorder %s248, %s249
      %p263 = scmp.eq.s32.totalorder %s26, 1
      %p264 = por %p262, %p263
      %p266 = scmp.ne.s32.totalorder %s249, %s265
      %p267 = scmp.eq.s32.totalorder %s26, 0
      %p268 = por %p266, %p267
      %p269 = scmp.le.s32.totalorder 1, %s20
      %p270 = scmp.lt.s32.totalorder %s20, 3
      %p271 = pnand %p269, %p270
      %p272 = pneg %p271
      // Predicated region
      $region9: #{deterministic_encoder.1} parent=5 // pred_check
        _
      $region10: #{deterministic_encoder.1} parent=5 // pred_check_branch
        %274 = sbr.rel (%p271) target = $region12
      $region11: #{deterministic_encoder.1} parent=5 // pred_region
        %s275 = ssub.s32 %s20, 1
        // Predicated region
        $region13: #{deterministic_encoder.1} parent=11 // pred_check
          %p276 = pneg %p109
        $region14: #{deterministic_encoder.1} parent=11 // pred_check_branch
          %278 = sbr.rel (%p276) target = $region16
        $region15: #{deterministic_encoder.1} parent=11 // pred_region
          _
        $region16: #{deterministic_encoder.1} parent=11 // pred_fallthru
          _
        // Predicated region
        $region17: #{deterministic_encoder.1} parent=11 // pred_check
          %p279 = pneg %p130
        $region18: #{deterministic_encoder.1} parent=11 // pred_check_branch
          %281 = sbr.rel (%p279) target = $region20
        $region19: #{deterministic_encoder.1} parent=11 // pred_region
          _
        $region20: #{deterministic_encoder.1} parent=11 // pred_fallthru
          _
        // Predicated region
        $region21: #{deterministic_encoder.1} parent=11 // pred_check
          %p282 = pneg %p151
        $region22: #{deterministic_encoder.1} parent=11 // pred_check_branch
          %284 = sbr.rel (%p282) target = $region24
        $region23: #{deterministic_encoder.1} parent=11 // pred_region
          %s286 = ssub.s32 16, 16
          %287 = vsyncadd [#allocation4], %s286
          %s289 = sshll.u32 [#allocation3], 4
          %s290 = int_to_ptr.vmem [resolvable:$true] %s289
          %292 = dma.hbm_to_vmem [thread:$0]  %s4, 16, %s290, [#allocation4]
        $region24: #{deterministic_encoder.1} parent=11 // pred_fallthru
          _
        // Predicated region
        $region25: #{deterministic_encoder.1} parent=11 // pred_check
          %p293 = pneg %p172
        $region26: #{deterministic_encoder.1} parent=11 // pred_check_branch
          %295 = sbr.rel (%p293) target = $region28
        $region27: #{deterministic_encoder.1} parent=11 // pred_region
          _
        $region28: #{deterministic_encoder.1} parent=11 // pred_fallthru
          _
        // Predicated region
        $region29: #{deterministic_encoder.1} parent=11 // pred_check
          %p296 = pneg %p193
        $region30: #{deterministic_encoder.1} parent=11 // pred_check_branch
          %298 = sbr.rel (%p296) target = $region32
        $region31: #{deterministic_encoder.1} parent=11 // pred_region
          %s300 = ssub.s32 16, 16
          %301 = vsyncadd [#allocation7], %s300
          %s303 = sshll.u32 [#allocation6], 4
          %s304 = int_to_ptr.vmem [resolvable:$true] %s303
          %306 = dma.hbm_to_vmem [thread:$0]  %s6, 16, %s304, [#allocation7]
        $region32: #{deterministic_encoder.1} parent=11 // pred_fallthru
          _
        // Predicated region
        $region33: #{deterministic_encoder.1} parent=11 // pred_check
          %p307 = pneg %p214
        $region34: #{deterministic_encoder.1} parent=11 // pred_check_branch
          %309 = sbr.rel (%p307) target = $region36
        $region35: #{deterministic_encoder.1} parent=11 // pred_region
          _
        $region36: #{deterministic_encoder.1} parent=11 // pred_fallthru
          _
        // Predicated region
        $region37: #{deterministic_encoder.1} parent=11 // pred_check
          %p310 = pneg %p235
        $region38: #{deterministic_encoder.1} parent=11 // pred_check_branch
          %312 = sbr.rel (%p310) target = $region40
        $region39: #{deterministic_encoder.1} parent=11 // pred_region
          %s314 = ssub.s32 16, 16
          %315 = vsyncadd [#allocation7], %s314
          %s317 = sshll.u32 [#allocation8], 4
          %s318 = int_to_ptr.vmem [resolvable:$true] %s317
          %320 = dma.hbm_to_vmem [thread:$0]  %s8, 16, %s318, [#allocation7]
        $region40: #{deterministic_encoder.1} parent=11 // pred_fallthru
          _
      $region12: #{deterministic_encoder.1} parent=5 // pred_fallthru
        _
      %p321 = scmp.lt.s32.totalorder %s20, 2
      // Predicated region
      $region41: #{deterministic_encoder.1} parent=5 // pred_check
        %p322 = pneg %p321
      $region42: #{deterministic_encoder.1} parent=5 // pred_check_branch
        %324 = sbr.rel (%p322) target = $region44
      $region43: #{deterministic_encoder.1} parent=5 // pred_region
        // Predicated region
        $region45: #{deterministic_encoder.1} parent=43 // pred_check
          %p325 = pneg %p54
        $region46: #{deterministic_encoder.1} parent=43 // pred_check_branch
          %327 = sbr.rel (%p325) target = $region48
        $region47: #{deterministic_encoder.1} parent=43 // pred_region
          %p328 = scmp.lt.s32.totalorder %s27, 1
          %s329 = scalar_select %p328, %s27, 1
          %p330 = scmp.lt.s32.totalorder %s28, 0
          %s331 = scalar_select %p330, %s28, 0
          %s332 = sadd.s32 %s331, %s329
          %s333 = smul.addr %s332, 8
          %s334 = scalar_lea.vmem %s0, %s333
        $region48: #{deterministic_encoder.1} parent=43 // pred_fallthru
          _
        // Predicated region
        $region49: #{deterministic_encoder.1} parent=43 // pred_check
          %p335 = pneg %p82
        $region50: #{deterministic_encoder.1} parent=43 // pred_check_branch
          %337 = sbr.rel (%p335) target = $region52
        $region51: #{deterministic_encoder.1} parent=43 // pred_region
          %p338 = scmp.lt.s32.totalorder %s27, 1
          %s339 = scalar_select %p338, %s27, 1
          %p340 = scmp.lt.s32.totalorder %s28, 0
          %s341 = scalar_select %p340, %s28, 0
          %s342 = sadd.s32 %s341, %s339
          %s343 = smul.addr %s342, 8
          %s344 = scalar_lea.vmem %s1, %s343
        $region52: #{deterministic_encoder.1} parent=43 // pred_fallthru
          _
      $region44: #{deterministic_encoder.1} parent=5 // pred_fallthru
        _
      %p345 = scmp.le.s32.totalorder 1, %s20
      %p346 = scmp.lt.s32.totalorder %s20, 3
      %p347 = pnand %p345, %p346
      %p348 = pneg %p347
      // Predicated region
      $region53: #{deterministic_encoder.1} parent=5 // pred_check
        _
      $region54: #{deterministic_encoder.1} parent=5 // pred_check_branch
        %350 = sbr.rel (%p347) target = $region56
      $region55: #{deterministic_encoder.1} parent=5 // pred_region
        %s351 = ssub.s32 %s20, 1
        // Predicated region
        $region57: #{deterministic_encoder.1} parent=55 // pred_check
          %p352 = pneg %p151
        $region58: #{deterministic_encoder.1} parent=55 // pred_check_branch
          %354 = sbr.rel (%p352) target = $region60
        $region59: #{deterministic_encoder.1} parent=55 // pred_region
          %355 = dma.done [#allocation4], 16
        $region60: #{deterministic_encoder.1} parent=55 // pred_fallthru
          _
        // Predicated region
        $region61: #{deterministic_encoder.1} parent=55 // pred_check
          %p356 = pneg %p193
        $region62: #{deterministic_encoder.1} parent=55 // pred_check_branch
          %358 = sbr.rel (%p356) target = $region64
        $region63: #{deterministic_encoder.1} parent=55 // pred_region
          %359 = dma.done [#allocation7], 16
        $region64: #{deterministic_encoder.1} parent=55 // pred_fallthru
          _
        // Predicated region
        $region65: #{deterministic_encoder.1} parent=55 // pred_check
          %p360 = pneg %p235
        $region66: #{deterministic_encoder.1} parent=55 // pred_check_branch
          %362 = sbr.rel (%p360) target = $region68
        $region67: #{deterministic_encoder.1} parent=55 // pred_region
          %363 = dma.done [#allocation7], 16
        $region68: #{deterministic_encoder.1} parent=55 // pred_fallthru
          _
        %p364 = scmp.lt.s32.totalorder %s29, 1
        %s365 = scalar_select %p364, %s29, 1
        %p366 = scmp.lt.s32.totalorder %s30, 0
        %s367 = scalar_select %p366, %s30, 0
        %s368 = sadd.s32 %s367, %s365
        %s369 = smul.addr %s368, 8
        %s370 = scalar_lea.vmem %s0, %s369
        %p371 = pneg %p60
        %p372 = pneg %p57
        %p373 = scmp.lt.s32.totalorder %s29, 1
        %s374 = scalar_select %p373, %s29, 1
        %p375 = scmp.lt.s32.totalorder %s30, 0
        %s376 = scalar_select %p375, %s30, 0
        %s377 = sadd.s32 %s376, %s374
        %s378 = smul.addr %s377, 8
        %s379 = scalar_lea.vmem %s1, %s378
        %p380 = pneg %p88
        %p381 = pneg %p85
        %p382 = pneg %p109
        %p383 = pneg %p106
        %p384 = pneg %p130
        %p385 = pneg %p127
        %p386 = pneg %p151
        %p387 = pneg %p148
        %p388 = pneg %p172
        %p389 = pneg %p169
        %p390 = pneg %p193
        %p391 = pneg %p190
        %p392 = pneg %p214
        %p393 = pneg %p211
        %p394 = pneg %p235
        %p395 = pneg %p232
        %p396 = pneg %p261
        %p397 = pneg %p258
        %s398 = sand.u32 %s248, 1
        %s399 = scalar_lea.sflag [#allocation5], %s398
        %s400 = sand.u32 %s248, 1
        %s401 = scalar_lea.vmem [#allocation9], %s400
        %p402 = scmp.lt.s32.totalorder %s29, 1
        %s403 = scalar_select %p402, %s29, 1
        %p404 = scmp.lt.s32.totalorder %s30, 0
        %s405 = scalar_select %p404, %s30, 0
        %s406 = sadd.s32 %s405, %s403
        %s407 = smul.addr %s406, 8
        %s408 = scalar_lea.vmem %s0, %s407
        %p409 = scmp.lt.s32.totalorder %s29, 1
        %s410 = scalar_select %p409, %s29, 1
        %p411 = scmp.lt.s32.totalorder %s30, 0
        %s412 = scalar_select %p411, %s30, 0
        %s413 = sadd.s32 %s412, %s410
        %s414 = smul.addr %s413, 8
        %s415 = scalar_lea.vmem %s1, %s414
        %p416 = scmp.eq.s32.totalorder %s30, 0
        // Predicated region
        $region69: #{deterministic_encoder.1} parent=55 // pred_check
          %p417 = pneg %p416
        $region70: #{deterministic_encoder.1} parent=55 // pred_check_branch
          %419 = sbr.rel (%p417) target = $region72
        $region71: #{deterministic_encoder.1} parent=55 // pred_region
          %vm420 = vcmask 253952
          %421 = vst.msk [vmem:[#allocation2] sm:$0x1] %vm420, 0.0
        $region72: #{deterministic_encoder.1} parent=55 // pred_fallthru
          _
        %v422 = vld [vmem:[%s408] sm:$0xff]
        %v423 = vld [vmem:[%s415] sm:$0xff]
        %v424 = vld [vmem:[%s2] sm:$0x3]
        %v425 = vld [vmem:[%s3] sm:$0x1]
        %427 = vset.pattern.permute.xlu0 0
        %428 = vperm.xlu0 %427, %v423
        %v429 = vpop.permute.xlu0 %428
        %v432 = vlaneseq
        %v433 = vshrl.u32 %v432, 7
        %v434 = vsub.s32 0, %v433
        %v435 = vrot.slane %v425, %v434
        %v437 = vmul.f32 %v429, %v435
        %vm438 = vcmask 15360
        %v440 = vsel %vm438, %v422, 0
        %vm442 = vcmask 1041408
        %v444 = vsel %vm442, %v424, 0
        %446 = vmatprep.subr.mxu0 0.0
        %447 = vmatpush1.msra.mxu0 %v444
        %448 = vmatprep.subr.mxu0 0.0
        %449 = vmatpush1.msra.mxu0 0.0
        %450 = vmatprep.subr.mxu0 0.0
        %451 = vmatpush1.msra.mxu0 0.0
        %452 = vmatprep.subr.mxu0 0.0
        %453 = vmatpush1.msra.mxu0 0.0
        %454 = vmatprep.subr.mxu0 0.0
        %455 = vmatpush1.msra.mxu0 0.0
        %456 = vmatprep.subr.mxu0 0.0
        %457 = vmatpush1.msra.mxu0 0.0
        %458 = vmatprep.subr.mxu0 0.0
        %459 = vmatpush1.msra.mxu0 0.0
        %460 = vmatprep.subr.mxu0 0.0
        %461 = vmatpush1.msra.mxu0 0.0
        %462 = vmatprep.subr.mxu0 0.0
        %463 = vmatpush1.msra.mxu0 0.0
        %464 = vmatprep.subr.mxu0 0.0
        %465 = vmatpush1.msra.mxu0 0.0
        %466 = vmatprep.subr.mxu0 0.0
        %467 = vmatpush1.msra.mxu0 0.0
        %468 = vmatprep.subr.mxu0 0.0
        %469 = vmatpush1.msra.mxu0 0.0
        %470 = vmatprep.subr.mxu0 0.0
        %471 = vmatpush1.msra.mxu0 0.0
        %472 = vmatprep.subr.mxu0 0.0
        %473 = vmatpush1.msra.mxu0 0.0
        %474 = vmatprep.subr.mxu0 0.0
        %475 = vmatpush1.msra.mxu0 0.0
        %476 = vmatprep.subr.mxu0 0.0
        %477 = vmatpush1.msra.mxu0 0.0
        %478 = vmatprep.subr.mxu0 0.0
        %479 = vmatpush1.msra.mxu0 0.0
        %480 = vmatprep.subr.mxu0 0.0
        %481 = vmatpush1.msra.mxu0 0.0
        %482 = vmatprep.subr.mxu0 0.0
        %483 = vmatpush1.msra.mxu0 0.0
        %484 = vmatprep.subr.mxu0 0.0
        %485 = vmatpush1.msra.mxu0 0.0
        %486 = vmatprep.subr.mxu0 0.0
        %487 = vmatpush1.msra.mxu0 0.0
        %488 = vmatprep.subr.mxu0 0.0
        %489 = vmatpush1.msra.mxu0 0.0
        %490 = vmatprep.subr.mxu0 0.0
        %491 = vmatpush1.msra.mxu0 0.0
        %492 = vmatprep.subr.mxu0 0.0
        %493 = vmatpush1.msra.mxu0 0.0
        %494 = vmatprep.subr.mxu0 0.0
        %495 = vmatpush1.msra.mxu0 0.0
        %496 = vmatprep.subr.mxu0 0.0
        %497 = vmatpush1.msra.mxu0 0.0
        %498 = vmatprep.subr.mxu0 0.0
        %499 = vmatpush1.msra.mxu0 0.0
        %500 = vmatprep.subr.mxu0 0.0
        %501 = vmatpush1.msra.mxu0 0.0
        %502 = vmatprep.subr.mxu0 0.0
        %503 = vmatpush1.msra.mxu0 0.0
        %504 = vmatprep.subr.mxu0 0.0
        %505 = vmatpush1.msra.mxu0 0.0
        %506 = vmatprep.subr.mxu0 0.0
        %507 = vmatpush1.msra.mxu0 0.0
        %508 = vmatprep.subr.mxu0 0.0
        %509 = vmatpush1.msra.mxu0 0.0
        %510 = vmatprep.mubr.f32.mxu0 0.0
        %511 = vmatmul.mubr.f32.gmra.mrb[0].mxu0 %v440
        %v512 = vpop.f32.mrb[0].mxu0
        %v513 = vadd.f32 %v437, %v512
        %v514 = vpop.f32.mrb[0].mxu0
        %515 = vdwg.mxu0
        %v516 = vld [vmem:[#allocation3] sm:$0x1]
        %v518 = vlaneseq
        %v519 = vshrl.u32 %v518, 7
        %v520 = vsub.s32 0, %v519
        %v521 = vrot.slane %v516, %v520
        %v523 = vadd.f32 %v513, %v521
        %v524 = vmax.f32 %v523, 0.0
        %v525 = vld [vmem:[%s5] sm:$0xff]
        %v526 = vld [vmem:[%s5 + $0x8] sm:$0xff]
        %v527 = vld [vmem:[%s5 + $0x10] sm:$0xff]
        %v528 = vld [vmem:[%s5 + $0x18] sm:$0xff]
        %v529 = vld [vmem:[#allocation6] sm:$0x1]
        %v531 = vlaneseq
        %v532 = vshrl.u32 %v531, 7
        %v533 = vsub.s32 0, %v532
        %v534 = vrot.slane %v529, %v533
        %vm536 = vcmask 261120
        %v538 = vsel %vm536, %v524, 0
        %540 = vmatprep.subr.mxu0 0.0
        %541 = vmatpush1.msra.mxu0 %v525
        %542 = vmatprep.subr.mxu0 0.0
        %543 = vmatpush1.msra.mxu0 %v526
        %544 = vmatprep.subr.mxu0 0.0
        %545 = vmatpush1.msra.mxu0 %v527
        %546 = vmatprep.subr.mxu0 0.0
        %547 = vmatpush1.msra.mxu0 %v528
        %548 = vmatprep.subr.mxu0 0.0
        %549 = vmatpush1.msra.mxu0 0.0
        %550 = vmatprep.subr.mxu0 0.0
        %551 = vmatpush1.msra.mxu0 0.0
        %552 = vmatprep.subr.mxu0 0.0
        %553 = vmatpush1.msra.mxu0 0.0
        %554 = vmatprep.subr.mxu0 0.0
        %555 = vmatpush1.msra.mxu0 0.0
        %556 = vmatprep.subr.mxu0 0.0
        %557 = vmatpush1.msra.mxu0 0.0
        %558 = vmatprep.subr.mxu0 0.0
        %559 = vmatpush1.msra.mxu0 0.0
        %560 = vmatprep.subr.mxu0 0.0
        %561 = vmatpush1.msra.mxu0 0.0
        %562 = vmatprep.subr.mxu0 0.0
        %563 = vmatpush1.msra.mxu0 0.0
        %564 = vmatprep.subr.mxu0 0.0
        %565 = vmatpush1.msra.mxu0 0.0
        %566 = vmatprep.subr.mxu0 0.0
        %567 = vmatpush1.msra.mxu0 0.0
        %568 = vmatprep.subr.mxu0 0.0
        %569 = vmatpush1.msra.mxu0 0.0
        %570 = vmatprep.subr.mxu0 0.0
        %571 = vmatpush1.msra.mxu0 0.0
        %572 = vmatprep.subr.mxu0 0.0
        %573 = vmatpush1.msra.mxu0 0.0
        %574 = vmatprep.subr.mxu0 0.0
        %575 = vmatpush1.msra.mxu0 0.0
        %576 = vmatprep.subr.mxu0 0.0
        %577 = vmatpush1.msra.mxu0 0.0
        %578 = vmatprep.subr.mxu0 0.0
        %579 = vmatpush1.msra.mxu0 0.0
        %580 = vmatprep.subr.mxu0 0.0
        %581 = vmatpush1.msra.mxu0 0.0
        %582 = vmatprep.subr.mxu0 0.0
        %583 = vmatpush1.msra.mxu0 0.0
        %584 = vmatprep.subr.mxu0 0.0
        %585 = vmatpush1.msra.mxu0 0.0
        %586 = vmatprep.subr.mxu0 0.0
        %587 = vmatpush1.msra.mxu0 0.0
        %588 = vmatprep.subr.mxu0 0.0
        %589 = vmatpush1.msra.mxu0 0.0
        %590 = vmatprep.subr.mxu0 0.0
        %591 = vmatpush1.msra.mxu0 0.0
        %592 = vmatprep.subr.mxu0 0.0
        %593 = vmatpush1.msra.mxu0 0.0
        %594 = vmatprep.subr.mxu0 0.0
        %595 = vmatpush1.msra.mxu0 0.0
        %596 = vmatprep.subr.mxu0 0.0
        %597 = vmatpush1.msra.mxu0 0.0
        %598 = vmatprep.subr.mxu0 0.0
        %599 = vmatpush1.msra.mxu0 0.0
        %600 = vmatprep.subr.mxu0 0.0
        %601 = vmatpush1.msra.mxu0 0.0
        %602 = vmatprep.subr.mxu0 0.0
        %603 = vmatpush1.msra.mxu0 0.0
        %604 = vmatprep.mubr.f32.mxu0 0.0
        %605 = vmatmul.mubr.f32.gmra.mrb[0].mxu0 %v538
        %v606 = vpop.f32.mrb[0].mxu0
        %v607 = vadd.f32 %v534, %v606
        %v608 = vpop.f32.mrb[0].mxu0
        %609 = vdwg.mxu0
        %v610 = vmax.f32 %v607, 0.0
        %v611 = vld [vmem:[#allocation2] sm:$0x1]
        %v612 = vsel %vm536, %v610, 0.0
        %v613 = vrot.slane %v612, 4
        %v614 = vadd.f32 %v612, %v613
        %v615 = vrot.slane %v614, 2
        %v616 = vadd.f32 %v614, %v615
        %v617 = vrot.slane %v616, 1
        %v618 = vadd.f32 %v616, %v617
        %v619 = vadd.f32 %v611, %v618
        %vm620 = vcmask 253952
        %621 = vst.msk [vmem:[#allocation2] sm:$0x1] %vm620, %v619
        // Predicated region
        $region73: #{deterministic_encoder.1} parent=55 // pred_check
          %p622 = pneg %p416
        $region74: #{deterministic_encoder.1} parent=55 // pred_check_branch
          %624 = sbr.rel (%p622) target = $region76
        $region75: #{deterministic_encoder.1} parent=55 // pred_region
          %v625 = vld [vmem:[#allocation2] sm:$0x1]
          %v626 = vmul.f32 %v625, 0.125
          %v627 = vld [vmem:[%s7] sm:$0xff]
          %v628 = vld [vmem:[%s7 + $0x8] sm:$0xff]
          %v629 = vld [vmem:[%s7 + $0x10] sm:$0xff]
          %v630 = vld [vmem:[%s7 + $0x18] sm:$0xff]
          %v631 = vld [vmem:[#allocation8] sm:$0x1]
          %v633 = vsel %vm536, %v626, 0
          %635 = vmatprep.subr.mxu0 0.0
          %636 = vmatpush1.msra.mxu0 %v627
          %637 = vmatprep.subr.mxu0 0.0
          %638 = vmatpush1.msra.mxu0 %v628
          %639 = vmatprep.subr.mxu0 0.0
          %640 = vmatpush1.msra.mxu0 %v629
          %641 = vmatprep.subr.mxu0 0.0
          %642 = vmatpush1.msra.mxu0 %v630
          %643 = vmatprep.subr.mxu0 0.0
          %644 = vmatpush1.msra.mxu0 0.0
          %645 = vmatprep.subr.mxu0 0.0
          %646 = vmatpush1.msra.mxu0 0.0
          %647 = vmatprep.subr.mxu0 0.0
          %648 = vmatpush1.msra.mxu0 0.0
          %649 = vmatprep.subr.mxu0 0.0
          %650 = vmatpush1.msra.mxu0 0.0
          %651 = vmatprep.subr.mxu0 0.0
          %652 = vmatpush1.msra.mxu0 0.0
          %653 = vmatprep.subr.mxu0 0.0
          %654 = vmatpush1.msra.mxu0 0.0
          %655 = vmatprep.subr.mxu0 0.0
          %656 = vmatpush1.msra.mxu0 0.0
          %657 = vmatprep.subr.mxu0 0.0
          %658 = vmatpush1.msra.mxu0 0.0
          %659 = vmatprep.subr.mxu0 0.0
          %660 = vmatpush1.msra.mxu0 0.0
          %661 = vmatprep.subr.mxu0 0.0
          %662 = vmatpush1.msra.mxu0 0.0
          %663 = vmatprep.subr.mxu0 0.0
          %664 = vmatpush1.msra.mxu0 0.0
          %665 = vmatprep.subr.mxu0 0.0
          %666 = vmatpush1.msra.mxu0 0.0
          %667 = vmatprep.subr.mxu0 0.0
          %668 = vmatpush1.msra.mxu0 0.0
          %669 = vmatprep.subr.mxu0 0.0
          %670 = vmatpush1.msra.mxu0 0.0
          %671 = vmatprep.subr.mxu0 0.0
          %672 = vmatpush1.msra.mxu0 0.0
          %673 = vmatprep.subr.mxu0 0.0
          %674 = vmatpush1.msra.mxu0 0.0
          %675 = vmatprep.subr.mxu0 0.0
          %676 = vmatpush1.msra.mxu0 0.0
          %677 = vmatprep.subr.mxu0 0.0
          %678 = vmatpush1.msra.mxu0 0.0
          %679 = vmatprep.subr.mxu0 0.0
          %680 = vmatpush1.msra.mxu0 0.0
          %681 = vmatprep.subr.mxu0 0.0
          %682 = vmatpush1.msra.mxu0 0.0
          %683 = vmatprep.subr.mxu0 0.0
          %684 = vmatpush1.msra.mxu0 0.0
          %685 = vmatprep.subr.mxu0 0.0
          %686 = vmatpush1.msra.mxu0 0.0
          %687 = vmatprep.subr.mxu0 0.0
          %688 = vmatpush1.msra.mxu0 0.0
          %689 = vmatprep.subr.mxu0 0.0
          %690 = vmatpush1.msra.mxu0 0.0
          %691 = vmatprep.subr.mxu0 0.0
          %692 = vmatpush1.msra.mxu0 0.0
          %693 = vmatprep.subr.mxu0 0.0
          %694 = vmatpush1.msra.mxu0 0.0
          %695 = vmatprep.subr.mxu0 0.0
          %696 = vmatpush1.msra.mxu0 0.0
          %697 = vmatprep.subr.mxu0 0.0
          %698 = vmatpush1.msra.mxu0 0.0
          %699 = vmatprep.mubr.f32.mxu0 0.0
          %700 = vmatmul.mubr.f32.gmra.mrb[0].mxu0 %v633
          %v701 = vpop.f32.mrb[0].mxu0
          %v702 = vadd.f32 %v631, %v701
          %v703 = vpop.f32.mrb[0].mxu0
          %704 = vdwg.mxu0
          %705 = vst.msk [vmem:[%s401] sm:$0x1] %vm620, %v702
        $region76: #{deterministic_encoder.1} parent=55 // pred_fallthru
          _
        %s706 = sand.u32 %s248, 1
        %s707 = scalar_lea.sflag [#allocation5], %s706
        %s708 = sand.u32 %s248, 1
        %s709 = scalar_lea.vmem [#allocation9], %s708
        // Predicated region
        $region77: #{deterministic_encoder.1} parent=55 // pred_check
          %p710 = pneg %p258
        $region78: #{deterministic_encoder.1} parent=55 // pred_check_branch
          %712 = sbr.rel (%p710) target = $region80
        $region79: #{deterministic_encoder.1} parent=55 // pred_region
          %s714 = ssub.s32 16, 16
          %715 = vsyncadd %s707, %s714
          %s716 = smul.addr %s29, 16
          %s717 = scalar_lea.hbm %s9, %s716
          %s719 = sshll.u32 %s709, 4
          %s720 = int_to_ptr.vmem [resolvable:$true] %s719
          %722 = dma.vmem_to_hbm [thread:$0]  %s720, 16, %s717, %s707
        $region80: #{deterministic_encoder.1} parent=55 // pred_fallthru
          _
      $region56: #{deterministic_encoder.1} parent=5 // pred_fallthru
        _
      %p723 = scmp.le.s32.totalorder 2, %s20
      // Predicated region
      $region81: #{deterministic_encoder.1} parent=5 // pred_check
        %p724 = pneg %p723
      $region82: #{deterministic_encoder.1} parent=5 // pred_check_branch
        %726 = sbr.rel (%p724) target = $region84
      $region83: #{deterministic_encoder.1} parent=5 // pred_region
        %s727 = ssub.s32 %s20, 2
        // Predicated region
        $region85: #{deterministic_encoder.1} parent=83 // pred_check
          %p728 = pneg %p264
        $region86: #{deterministic_encoder.1} parent=83 // pred_check_branch
          %730 = sbr.rel (%p728) target = $region88
        $region87: #{deterministic_encoder.1} parent=83 // pred_region
          %s731 = sand.u32 %s249, 1
          %s732 = scalar_lea.sflag [#allocation5], %s731
          %s733 = sand.u32 %s249, 1
          %s734 = scalar_lea.vmem [#allocation9], %s733
          %735 = dma.done %s732, 16
        $region88: #{deterministic_encoder.1} parent=83 // pred_fallthru
          _
      $region84: #{deterministic_encoder.1} parent=5 // pred_fallthru
        _
    $region6: #{deterministic_encoder.1} parent=1 // loop_footer
      %s24 = sadd.s32 1, %s20
    $region7: #{deterministic_encoder.1} parent=1 // loop_footer_branch
      %19 = sbr.rel target = $region3
    $region8: #{deterministic_encoder.1} parent=1 // loop_exit
      _
    %736 = vsyncpa [#allocation4], 1
    %s737 = scalar_lea.sflag [#allocation4], 1
    %738 = vsyncpa %s737, 1
    %739 = vsyncpa [#allocation7], 1
    %740 = vsyncpa [#allocation5], 1
    %s741 = scalar_lea.sflag [#allocation5], 1
    %742 = vsyncpa %s741, 1

</llo_original>
